<compile_context>
chip_gen: v7x
topology: tpu7x:2x2x1
jax: 0.10.0
libtpu: 0.0.40
codegen_flags: <defaults>
</compile_context>

<pallas_src>
import numpy as np
import jax
import jax.numpy as jnp
from jax.experimental import pallas as pl
from jax.experimental.pallas import tpu as pltpu

N_QUBITS = 5
DIM = 1 << N_QUBITS          # 32 basis states
HALF = DIM // 2 + 1          # 17: conjugate-symmetric half of the spectrum (k = 0..16)
CS_ROWS = 40                 # 2*HALF = 34 rows, padded to a sublane multiple of 8
PAD_ROWS = 8                 # sublane-aligned row count for the angle / output slabs
SEL_COLS = 16                # [cos rows 0..7 | sin rows 8..15] slab width


def _qft_head_kernel(x_ref, sel_ref, cs_ref, zz_ref, o_ref):
    # x_ref:   (8, TB)    rows 0..4 = RY angles (batch on the 128-lane axis), rows 5..7 = 0.
    # sel_ref: (160, 16)  block-diagonal RY selector: rows 32*i+m pick cos_i (col i) or
    #                     sin_i (col 8+i) according to bit_i(m) (wire 0 = MSB).
    # cs_ref:  (40, 32)   rows 0..16 = Re(F)[0:17], rows 17..33 = Im(F)[0:17], rest 0.
    # zz_ref:  (8, 40)    folded PauliZ weights (k and N-k contributions summed), rows 5..7 = 0.
    # o_ref:   (8, TB)    rows 0..4 = <PauliZ(wire i)>, rows 5..7 = 0.
    half = x_ref[...] * 0.5
    c = jnp.cos(half)                                   # (8, TB)   EUP
    s = jnp.sin(half)                                   # (8, TB)   EUP
    slab = jnp.concatenate([c, s], axis=0)              # (16, TB)  sublane-aligned copy

    # RY select as a single MXU pass (rides the near-empty vector-extended slot):
    #   f[32*i + m, b] = cos(x_i/2) if bit_i(m) == 0 else sin(x_i/2)
    f = jnp.dot(sel_ref[...], slab, preferred_element_type=jnp.float32)       # (160, TB)

    # Product state after the RY layer: psi0[m, b] = prod_i f_i[m, b].
    psi0 = (f[0:32] * f[32:64]) * (f[64:96] * f[96:128]) * f[128:160]         # (32, TB)

    # Half-spectrum QFT (psi0 is real -> prob[k] == prob[32-k]): one MXU pass gives
    # Re(F)@psi0 (rows 0..16) and Im(F)@psi0 (rows 17..33); square elementwise.
    cs_psi = jnp.dot(cs_ref[...], psi0, preferred_element_type=jnp.float32)   # (40, TB)
    sq = cs_psi * cs_psi

    # RZ(theta) after the QFT is diagonal -> probabilities (hence every <Z_i>) are
    # unchanged for any theta; theta is initialized to zeros anyway.
    # <Z_i> = sum_k w_i(k) * (re_k^2 + im_k^2), with k/(32-k) terms folded into w.
    o_ref[...] = jnp.dot(zz_ref[...], sq, preferred_element_type=jnp.float32)  # (8, TB)


def _build_constants():
    """Host-side constant tables (all tiny, VMEM-resident via constant index_maps)."""
    k = np.arange(DIM)
    bit_tbl = ((k[:, None] >> (N_QUBITS - 1 - np.arange(N_QUBITS))[None, :]) & 1
               ).astype(np.float32)                                   # (32, 5), wire 0 = MSB

    # Block-diagonal 0/1 selector: exactly one nonzero per row (exact under any MXU precision).
    sel_np = np.zeros((N_QUBITS * DIM, SEL_COLS), np.float32)
    for i in range(N_QUBITS):
        sel_np[DIM * i:DIM * (i + 1), i] = 1.0 - bit_tbl[:, i]        # pick cos_i
        sel_np[DIM * i:DIM * (i + 1), 8 + i] = bit_tbl[:, i]          # pick sin_i

    # Half-spectrum QFT matrix rows k = 0..16.
    ang = 2.0 * np.pi * np.outer(np.arange(HALF), k) / DIM
    cs_np = np.zeros((CS_ROWS, DIM), np.float32)
    cs_np[:HALF] = np.cos(ang) / np.sqrt(DIM)                         # Re(F)[0:17]
    cs_np[HALF:2 * HALF] = np.sin(ang) / np.sqrt(DIM)                 # Im(F)[0:17]

    # PauliZ weights with the k / (32-k) contributions folded (prob[k] == prob[32-k]).
    zsign = 1.0 - 2.0 * bit_tbl                                       # (32, 5)
    w = np.zeros((HALF, N_QUBITS), np.float32)
    w[0] = zsign[0]
    w[DIM // 2] = zsign[DIM // 2]
    for kk in range(1, DIM // 2):
        w[kk] = zsign[kk] + zsign[DIM - kk]
    zz_np = np.zeros((PAD_ROWS, CS_ROWS), np.float32)
    zz_np[:N_QUBITS, :HALF] = w.T          # weights for re^2 rows
    zz_np[:N_QUBITS, HALF:2 * HALF] = w.T  # weights for im^2 rows (k=0,16 rows are 0 anyway)

    return jnp.asarray(sel_np), jnp.asarray(cs_np), jnp.asarray(zz_np)


def qft_attention_head(x, n_qubits=N_QUBITS, block_cols=8192):
    """x: (bs, seq_len, embed_dim) float array -> (bs, seq_len, n_qubits)."""
    assert n_qubits == N_QUBITS
    bs, seq_len, embed_dim = x.shape
    assert embed_dim >= n_qubits
    B = bs * seq_len

    # TODO(synk): theta (the RZ parameters, torch.zeros init) is intentionally unused:
    # RZ after the QFT is diagonal, so <Z_i> is independent of theta (its gradient is 0).

    sel, cs, zz = _build_constants()

    # --- lane-dense block selection --------------------------------------------------
    lane = 128
    block_cols = max(lane, (int(block_cols) // lane) * lane)          # multiple of 128
    # Keep >= 2 grid steps whenever B > 128 so v7x's two TensorCores both get work
    # (with dimension_semantics=("parallel",)); harmless serial loop on v5e/v6e.
    two_step_cap = pl.cdiv(pl.cdiv(B, 2), lane) * lane
    block_cols = min(block_cols, max(lane, two_step_cap))
    grid = (pl.cdiv(B, block_cols),)                                  # partial last block OK

    # Transposed layout: angles as (8, B), batch on the 128-lane axis.  Rows 5..7 must be
    # finite (zero) because the selector matmul multiplies them by 0 (NaN*0 would poison).
    x_crop = x[:, :, :n_qubits].reshape(B, n_qubits).astype(jnp.float32)
    x_t = jnp.zeros((PAD_ROWS, B), jnp.float32).at[:n_qubits, :].set(x_crop.T)

    out_t = pl.pallas_call(
        _qft_head_kernel,
        out_shape=jax.ShapeDtypeStruct((PAD_ROWS, B), jnp.float32),
        grid=grid,
        in_specs=[
            pl.BlockSpec((PAD_ROWS, block_cols), lambda i: (0, i)),
            pl.BlockSpec((N_QUBITS * DIM, SEL_COLS), lambda i: (0, 0)),   # VMEM-resident
            pl.BlockSpec((CS_ROWS, DIM), lambda i: (0, 0)),               # VMEM-resident
            pl.BlockSpec((PAD_ROWS, CS_ROWS), lambda i: (0, 0)),          # VMEM-resident
        ],
        out_specs=pl.BlockSpec((PAD_ROWS, block_cols), lambda i: (0, i)),
        compiler_params=pltpu.CompilerParams(
            dimension_semantics=("parallel",),
            # ~1.1-1.3 KB/column of live temporaries at TB=8192 -> ~11 MB; 32 MiB gives
            # headroom over v5e's 16 MiB scoped default and stays within v7x's 64 MiB.
            vmem_limit_bytes=32 * 1024 * 1024,
        ),
    )(x_t, sel, cs, zz)

    return out_t[:n_qubits, :].T.reshape(bs, seq_len, n_qubits)


def _reference(x, n_qubits=N_QUBITS):
    """Plain-JAX statevector reference (same math, complex arithmetic, full spectrum)."""
    bs, seq_len, _ = x.shape
    B = bs * seq_len
    xc = x[:, :, :n_qubits].reshape(B, n_qubits).astype(jnp.float32)
    c, s = jnp.cos(xc / 2), jnp.sin(xc / 2)
    m = np.arange(DIM)
    psi0 = jnp.ones((B, DIM), jnp.float32)
    for i in range(n_qubits):
        bit = (m >> (n_qubits - 1 - i)) & 1
        psi0 = psi0 * jnp.where(bit[None, :] == 0, c[:, i:i + 1], s[:, i:i + 1])
    k = np.arange(DIM)
    F = np.exp(2j * np.pi * np.outer(k, k) / DIM) / np.sqrt(DIM)
    psi1 = psi0.astype(jnp.complex64) @ jnp.asarray(F.T, jnp.complex64)
    prob = jnp.abs(psi1) ** 2
    bits = (k[:, None] >> (n_qubits - 1 - np.arange(n_qubits))[None, :]) & 1
    zsign = jnp.asarray(1.0 - 2.0 * bits, jnp.float32)
    return (prob @ zsign).reshape(bs, seq_len, n_qubits)


if __name__ == "__main__":
    # 1) Small shape matching the module's forward (bs, seq_len, embed_dim); grid of 1.
    bs, seq_len, embed_dim = 2, 8, 32
    key = jax.random.PRNGKey(0)
    x = jax.random.normal(key, (bs, seq_len, embed_dim), dtype=jnp.float32)
    out = jax.block_until_ready(qft_attention_head(x))
    assert out.shape == (bs, seq_len, N_QUBITS)
    np.testing.assert_allclose(np.asarray(out), np.asarray(_reference(x)),
                               atol=1e-5, rtol=1e-5)

    # 2) Multi-step grid with a partial (masked) last block: B=300, block_cols=128 -> grid=3.
    x2 = jax.random.normal(jax.random.PRNGKey(1), (3, 100, embed_dim), jnp.float32)
    out2 = jax.block_until_ready(qft_attention_head(x2, block_cols=128))
    np.testing.assert_allclose(np.asarray(out2), np.asarray(_reference(x2)),
                               atol=1e-5, rtol=1e-5)

    # 3) Default (large-block) path with the >=2-step clamp and a partial last block:
    #    B=2800 -> block_cols=1408, grid=2.
    x3 = jax.random.normal(jax.random.PRNGKey(2), (4, 700, embed_dim), jnp.float32)
    out3 = jax.block_until_ready(qft_attention_head(x3))
    np.testing.assert_allclose(np.asarray(out3), np.asarray(_reference(x3)),
                               atol=1e-5, rtol=1e-5)

    print("KERNEL_OK")
</pallas_src>

<mosaic_0001>
module attributes {stable_mosaic.version = 11 : i64} {
  func.func @_qft_head_kernel(%arg0: i32, %arg1: memref<8x128xf32, #tpu.memory_space<vmem>>, %arg2: memref<160x16xf32, #tpu.memory_space<vmem>>, %arg3: memref<40x32xf32, #tpu.memory_space<vmem>>, %arg4: memref<8x40xf32, #tpu.memory_space<vmem>>, %arg5: memref<8x128xf32, #tpu.memory_space<vmem>>) attributes {dimension_semantics = [#tpu.dimension_semantics<parallel>], iteration_bounds = array<i64: 1>, scalar_prefetch = 0 : i64, scratch_operands = 0 : i64, tpu.core_type = #tpu.core_type<tc>, window_params = [{transform_indices = @transform_0, window_bounds = array<i64: 8, 128>}, {pipeline_mode = #tpu.pipeline_mode<synchronous>, transform_indices = @transform_1, window_bounds = array<i64: 160, 16>}, {pipeline_mode = #tpu.pipeline_mode<synchronous>, transform_indices = @transform_2, window_bounds = array<i64: 40, 32>}, {pipeline_mode = #tpu.pipeline_mode<synchronous>, transform_indices = @transform_3, window_bounds = array<i64: 8, 40>}, {transform_indices = @transform_4, window_bounds = array<i64: 8, 128>}]} {
    %c0 = arith.constant 0 : index
    %c0_0 = arith.constant 0 : index
    %0 = vector.load %arg1[%c0, %c0_0] : memref<8x128xf32, #tpu.memory_space<vmem>>, vector<8x128xf32>
    %cst = arith.constant 5.000000e-01 : f32
    %1 = vector.broadcast %cst : f32 to vector<8x128xf32>
    %2 = arith.mulf %0, %1 : vector<8x128xf32>
    %3 = math.cos %2 : vector<8x128xf32>
    %4 = math.sin %2 : vector<8x128xf32>
    %5 = tpu.concatenate %3, %4 in 0 : vector<8x128xf32>, vector<8x128xf32> -> vector<16x128xf32>
    %c0_1 = arith.constant 0 : index
    %c0_2 = arith.constant 0 : index
    %6 = vector.load %arg2[%c0_1, %c0_2] : memref<160x16xf32, #tpu.memory_space<vmem>>, vector<160x16xf32>
    %cst_3 = arith.constant dense<0.000000e+00> : vector<160x128xf32>
    %7 = tpu.matmul %6, %5, %cst_3 {dimension_numbers = #tpu.dot_dimension_numbers<[1], [0], [0], [1], [0, 0, 1, 1], [], []>} : vector<160x16xf32>, vector<16x128xf32>, vector<160x128xf32> -> vector<160x128xf32>
    %8 = vector.extract_strided_slice %7 {offsets = [0, 0], sizes = [32, 128], strides = [1, 1]} : vector<160x128xf32> to vector<32x128xf32>
    %9 = vector.extract_strided_slice %7 {offsets = [32, 0], sizes = [32, 128], strides = [1, 1]} : vector<160x128xf32> to vector<32x128xf32>
    %10 = arith.mulf %8, %9 : vector<32x128xf32>
    %11 = vector.extract_strided_slice %7 {offsets = [64, 0], sizes = [32, 128], strides = [1, 1]} : vector<160x128xf32> to vector<32x128xf32>
    %12 = vector.extract_strided_slice %7 {offsets = [96, 0], sizes = [32, 128], strides = [1, 1]} : vector<160x128xf32> to vector<32x128xf32>
    %13 = arith.mulf %11, %12 : vector<32x128xf32>
    %14 = arith.mulf %10, %13 : vector<32x128xf32>
    %15 = vector.extract_strided_slice %7 {offsets = [128, 0], sizes = [32, 128], strides = [1, 1]} : vector<160x128xf32> to vector<32x128xf32>
    %16 = arith.mulf %14, %15 : vector<32x128xf32>
    %c0_4 = arith.constant 0 : index
    %c0_5 = arith.constant 0 : index
    %17 = vector.load %arg3[%c0_4, %c0_5] : memref<40x32xf32, #tpu.memory_space<vmem>>, vector<40x32xf32>
    %cst_6 = arith.constant dense<0.000000e+00> : vector<40x128xf32>
    %18 = tpu.matmul %17, %16, %cst_6 {dimension_numbers = #tpu.dot_dimension_numbers<[1], [0], [0], [1], [0, 0, 1, 1], [], []>} : vector<40x32xf32>, vector<32x128xf32>, vector<40x128xf32> -> vector<40x128xf32>
    %19 = arith.mulf %18, %18 : vector<40x128xf32>
    %c0_7 = arith.constant 0 : index
    %c0_8 = arith.constant 0 : index
    %20 = vector.load %arg4[%c0_7, %c0_8] : memref<8x40xf32, #tpu.memory_space<vmem>>, vector<8x40xf32>
    %cst_9 = arith.constant dense<0.000000e+00> : vector<8x128xf32>
    %21 = tpu.matmul %20, %19, %cst_9 {dimension_numbers = #tpu.dot_dimension_numbers<[1], [0], [0], [1], [0, 0, 1, 1], [], []>} : vector<8x40xf32>, vector<40x128xf32>, vector<8x128xf32> -> vector<8x128xf32>
    %c0_10 = arith.constant 0 : index
    %c0_11 = arith.constant 0 : index
    %22 = vector.load %arg5[%c0_10, %c0_11] : memref<8x128xf32, #tpu.memory_space<vmem>>, vector<8x128xf32>
    tpu.vector_store %arg5[%c0_10, %c0_11], %21 {strides = array<i32>} : memref<8x128xf32, #tpu.memory_space<vmem>>, vector<8x128xf32>,
    return
  }
  func.func @transform_0(%arg0: i32) -> (i32, i32) {
    %c0_i32 = arith.constant 0 : i32
    %c0_i32_0 = arith.constant 0 : i32
    return %c0_i32, %arg0 : i32, i32
  }
  func.func @transform_1(%arg0: i32) -> (i32, i32) {
    %c0_i32 = arith.constant 0 : i32
    %c0_i32_0 = arith.constant 0 : i32
    %c0_i32_1 = arith.constant 0 : i32
    return %c0_i32, %c0_i32_0 : i32, i32
  }
  func.func @transform_2(%arg0: i32) -> (i32, i32) {
    %c0_i32 = arith.constant 0 : i32
    %c0_i32_0 = arith.constant 0 : i32
    %c0_i32_1 = arith.constant 0 : i32
    return %c0_i32, %c0_i32_0 : i32, i32
  }
  func.func @transform_3(%arg0: i32) -> (i32, i32) {
    %c0_i32 = arith.constant 0 : i32
    %c0_i32_0 = arith.constant 0 : i32
    %c0_i32_1 = arith.constant 0 : i32
    return %c0_i32, %c0_i32_0 : i32, i32
  }
  func.func @transform_4(%arg0: i32) -> (i32, i32) {
    %c0_i32 = arith.constant 0 : i32
    %c0_i32_0 = arith.constant 0 : i32
    return %c0_i32, %arg0 : i32, i32
  }
}

</mosaic_0001>

<llo_original>
// kernel: tpu_custom_call.1
$region0: #{tpu_custom_call.1}
  #allocation0 [shape = 'u32[]', space=smem, size = 0x4, offset = 0x4, fixed_abs, tag = 'smem constant byte address 0x4 - core index']
  #allocation1 [shape = 'u32[144,128]{1,0:T(1,128)}', space=vmem, size = 0x12000, scoped, tag = 'internal scratch']
  %s0 = inlined_call_operand.vmem [shape: f32[8,16], index: 0, kind: input, shape index: {}]
  %s1 = inlined_call_operand.vmem [shape: f32[160,16], index: 1, kind: input, shape index: {}]
  %s2 = inlined_call_operand.vmem [shape: f32[40,32], index: 2, kind: input, shape index: {}]
  %s3 = inlined_call_operand.vmem [shape: f32[8,40], index: 3, kind: input, shape index: {}]
  %s4 = inlined_call_operand.hbm [shape: f32[8,16], index: 4, kind: output, shape index: {}]
  %s5 = sld [smem:[#allocation0]]
  $region26: #{tpu_custom_call.1} parent=0
    _
  %s7 = ssub.s32 1, %s5
  %s8 = scalar_select 0, %s7, %s5
  $region1: #{tpu_custom_call.1} parent=0
    #allocation2 [shape = 'u8[4096]{0}', space=vmem, size = 0x1000, scoped, tag = 'output window, operand 0, single buffered']
    #allocation3 [shape = 's32[1]{0}', space=sflag, size = 0x4, scoped, tag = 'scoped memory for tpu_custom_call.1']
    %9 = vsyncpa [#allocation3], 0
    // Predicated region
    $region2: #{tpu_custom_call.1} parent=1 // pred_check
      _
    $region3: #{tpu_custom_call.1} parent=1 // pred_check_branch
      %11 = sbr.rel (0) target = $region5
    $region4: #{tpu_custom_call.1} parent=1 // pred_region
      _
    $region5: #{tpu_custom_call.1} parent=1 // pred_fallthru
      _
    // Predicated region
    $region6: #{tpu_custom_call.1} parent=1 // pred_check
      _
    $region7: #{tpu_custom_call.1} parent=1 // pred_check_branch
      %13 = sbr.rel (0) target = $region9
    $region8: #{tpu_custom_call.1} parent=1 // pred_region
      _
    $region9: #{tpu_custom_call.1} parent=1 // pred_fallthru
      _
    // Predicated region
    $region10: #{tpu_custom_call.1} parent=1 // pred_check
      _
    $region11: #{tpu_custom_call.1} parent=1 // pred_check_branch
      %15 = sbr.rel (0) target = $region13
    $region12: #{tpu_custom_call.1} parent=1 // pred_region
      _
    $region13: #{tpu_custom_call.1} parent=1 // pred_fallthru
      _
    // Predicated region
    $region14: #{tpu_custom_call.1} parent=1 // pred_check
      _
    $region15: #{tpu_custom_call.1} parent=1 // pred_check_branch
      %17 = sbr.rel (0) target = $region17
    $region16: #{tpu_custom_call.1} parent=1 // pred_region
      _
    $region17: #{tpu_custom_call.1} parent=1 // pred_fallthru
      _
    %v18 = vld [vmem:[%s0] sm:$0xff]
    %v19 = vmul.f32 %v18, 0.5
    %v20 = vand.u32 2147483647, %v19
    %vm21 = vcmp.le.f32.partialorder %v20, 0.7853982
    %vm22 = vcmp.lt.s32.totalorder %v19, 0
    %v23 = vand.u32 %v19, 2139095040
    %v24 = vshrl.u32 %v23, 23
    %v25 = vsub.s32 %v24, 127
    %v26 = vand.u32 2147483647, %v19
    %v27 = vand.u32 %v26, 8388607
    %v28 = vor.u32 %v27, 8388608
    %v29 = vsub.s32 0, %v28
    %v30 = vadd.s32 %v25, 1
    %vm31 = vcmp.gt.s32.totalorder %v30, 0
    %v32 = vsel %vm31, %v30, 0
    %v33 = vshrl.u32 %v32, 5
    %v34 = vand.u32 %v32, 31
    %v35 = vsub.s32 32, %v34
    %v36 = vshrl.u32 683565275, %v35
    %v37 = vshll.u32 683565275, %v34
    %v38 = vshrl.u32 2475754826, %v35
    %v39 = vor.u32 %v37, %v38
    %v40 = vshll.u32 2475754826, %v34
    %v41 = vshrl.u32 2131351028, %v35
    %v42 = vor.u32 %v40, %v41
    %v43 = vshll.u32 2131351028, %v34
    %v44 = vshrl.u32 2102212464, %v35
    %v45 = vor.u32 %v43, %v44
    %v46 = vshll.u32 2102212464, %v34
    %v47 = vshrl.u32 920167782, %v35
    %v48 = vor.u32 %v46, %v47
    %v49 = vshll.u32 920167782, %v34
    %v50 = vshrl.u32 1326507024, %v35
    %v51 = vor.u32 %v49, %v50
    %vm52 = vcmp.lt.s32.totalorder %v33, 1
    %vm53 = vcmp.lt.s32.totalorder %v33, 2
    %vm54 = vcmp.lt.s32.totalorder %v33, 3
    %vm55 = vcmp.lt.s32.totalorder %v33, 4
    %v56 = vsel %vm52, %v36, %v39
    %v57 = vsel %vm55, %v45, 2102212464
    %v58 = vsel %vm54, %v42, %v57
    %v59 = vsel %vm53, %v56, %v58
    %v60 = vsel %vm52, %v39, %v42
    %v61 = vsel %vm55, %v48, 920167782
    %v62 = vsel %vm54, %v45, %v61
    %v63 = vsel %vm53, %v60, %v62
    %v64 = vsel %vm52, %v42, %v45
    %v65 = vsel %vm55, %v51, 1326507024
    %v66 = vsel %vm54, %v48, %v65
    %v67 = vsel %vm53, %v64, %v66
    %v68 = vshll.u32 %v28, 8
    %v69 = vmul.u32.u64.compose %v68, %v67
    %v70 = vextract.low.u32 %v69
    %v71 = vextract.high.u32 %v69
    %v72 = vmul.u32.u64.compose %v68, %v63
    %v73 = vextract.low.u32 %v72
    %v74 = vextract.high.u32 %v72
    %v75 = vmul.u32 %v68, %v59
    %v76 = vadd.s32 %v71, %v73
    %vm77 = vc.u32 %v71, %v73
    %v78 = vadd.s32 %v74, 1
    %v79 = vsel %vm77, %v78, %v74
    %v80 = vadd.s32 %v75, %v79
    %v81 = vadd.s32 %v80, 536870912
    %v82 = vshrl.u32 %v81, 30
    %v83 = vshll.u32 %v82, 30
    %v84 = vsub.s32 %v80, %v83
    %vm85 = vcmp.lt.s32.totalorder %v84, 0
    %v86 = vsub.s32 0, %v84
    %v87 = vsel %vm85, %v86, %v84
    %v88 = vclz %v87
    %v89 = vsub.s32 %v88, 2
    %vm90 = vcmp.gt.s32.totalorder 0, %v89
    %v91 = vsel %vm90, 0, %v89
    %v92 = vsub.s32 32, %v91
    %v93 = vshll.u32 %v84, %v91
    %v94 = vshrl.u32 %v76, %v92
    %v95 = vor.u32 %v93, %v94
    %v96 = vsub.s32 4294967266, %v91
    %v97 = vadd.s32 %v96, 127
    %v98 = vshll.u32 %v97, 23
    %v99 = vor.u32 4788187, %v98
    %v100 = vand.u32 2147483647, %v99
    %v102 = vcvt.s32.f32 %v95
    %v103 = vmul.f32 %v102, %v100
    %v104 = vxor.u32 %v103, 2147483648
    %v105 = vsel %vm22, %v104, %v103
    %v106 = vsub.s32 4, %v82
    %v107 = vsel %vm22, %v106, %v82
    %v108 = vsel %vm21, %v19, %v105
    %v109 = vsel %vm21, 0, %v107
    %v110 = vcosq.f32.pop %v108
    %v111 = vsinq.f32.pop %v108
    %vm112 = vweird.f32 %v19
    %v113 = vand.u32 %v109, 3
    %vm114 = vcmp.lt.s32.totalorder %v113, 2
    %vm115 = vcmp.eq.s32.totalorder %v113, 0
    %v116 = vxor.u32 %v111, 2147483648
    %v117 = vsel %vm115, %v110, %v116
    %vm118 = vcmp.eq.s32.totalorder %v113, 2
    %v119 = vxor.u32 %v110, 2147483648
    %v120 = vsel %vm118, %v119, %v111
    %v121 = vsel %vm114, %v117, %v120
    %v122 = vsel %vm112, nan, %v121
    %v123 = vand.u32 2147483647, %v19
    %vm124 = vcmp.le.f32.partialorder %v123, 0.7853982
    %vm125 = vcmp.lt.s32.totalorder %v19, 0
    %v126 = vand.u32 %v19, 2139095040
    %v127 = vshrl.u32 %v126, 23
    %v128 = vsub.s32 %v127, 127
    %v129 = vand.u32 2147483647, %v19
    %v130 = vand.u32 %v129, 8388607
    %v131 = vor.u32 %v130, 8388608
    %v132 = vsub.s32 0, %v131
    %v133 = vadd.s32 %v128, 1
    %vm134 = vcmp.gt.s32.totalorder %v133, 0
    %v135 = vsel %vm134, %v133, 0
    %v136 = vshrl.u32 %v135, 5
    %v137 = vand.u32 %v135, 31
    %v138 = vsub.s32 32, %v137
    %v139 = vshrl.u32 683565275, %v138
    %v140 = vshll.u32 683565275, %v137
    %v141 = vshrl.u32 2475754826, %v138
    %v142 = vor.u32 %v140, %v141
    %v143 = vshll.u32 2475754826, %v137
    %v144 = vshrl.u32 2131351028, %v138
    %v145 = vor.u32 %v143, %v144
    %v146 = vshll.u32 2131351028, %v137
    %v147 = vshrl.u32 2102212464, %v138
    %v148 = vor.u32 %v146, %v147
    %v149 = vshll.u32 2102212464, %v137
    %v150 = vshrl.u32 920167782, %v138
    %v151 = vor.u32 %v149, %v150
    %v152 = vshll.u32 920167782, %v137
    %v153 = vshrl.u32 1326507024, %v138
    %v154 = vor.u32 %v152, %v153
    %vm155 = vcmp.lt.s32.totalorder %v136, 1
    %vm156 = vcmp.lt.s32.totalorder %v136, 2
    %vm157 = vcmp.lt.s32.totalorder %v136, 3
    %vm158 = vcmp.lt.s32.totalorder %v136, 4
    %v159 = vsel %vm155, %v139, %v142
    %v160 = vsel %vm158, %v148, 2102212464
    %v161 = vsel %vm157, %v145, %v160
    %v162 = vsel %vm156, %v159, %v161
    %v163 = vsel %vm155, %v142, %v145
    %v164 = vsel %vm158, %v151, 920167782
    %v165 = vsel %vm157, %v148, %v164
    %v166 = vsel %vm156, %v163, %v165
    %v167 = vsel %vm155, %v145, %v148
    %v168 = vsel %vm158, %v154, 1326507024
    %v169 = vsel %vm157, %v151, %v168
    %v170 = vsel %vm156, %v167, %v169
    %v171 = vshll.u32 %v131, 8
    %v172 = vmul.u32.u64.compose %v171, %v170
    %v173 = vextract.low.u32 %v172
    %v174 = vextract.high.u32 %v172
    %v175 = vmul.u32.u64.compose %v171, %v166
    %v176 = vextract.low.u32 %v175
    %v177 = vextract.high.u32 %v175
    %v178 = vmul.u32 %v171, %v162
    %v179 = vadd.s32 %v174, %v176
    %vm180 = vc.u32 %v174, %v176
    %v181 = vadd.s32 %v177, 1
    %v182 = vsel %vm180, %v181, %v177
    %v183 = vadd.s32 %v178, %v182
    %v184 = vadd.s32 %v183, 536870912
    %v185 = vshrl.u32 %v184, 30
    %v186 = vshll.u32 %v185, 30
    %v187 = vsub.s32 %v183, %v186
    %vm188 = vcmp.lt.s32.totalorder %v187, 0
    %v189 = vsub.s32 0, %v187
    %v190 = vsel %vm188, %v189, %v187
    %v191 = vclz %v190
    %v192 = vsub.s32 %v191, 2
    %vm193 = vcmp.gt.s32.totalorder 0, %v192
    %v194 = vsel %vm193, 0, %v192
    %v195 = vsub.s32 32, %v194
    %v196 = vshll.u32 %v187, %v194
    %v197 = vshrl.u32 %v179, %v195
    %v198 = vor.u32 %v196, %v197
    %v199 = vsub.s32 4294967266, %v194
    %v200 = vadd.s32 %v199, 127
    %v201 = vshll.u32 %v200, 23
    %v202 = vor.u32 4788187, %v201
    %v203 = vand.u32 2147483647, %v202
    %v205 = vcvt.s32.f32 %v198
    %v206 = vmul.f32 %v205, %v203
    %v207 = vxor.u32 %v206, 2147483648
    %v208 = vsel %vm125, %v207, %v206
    %v209 = vsub.s32 4, %v185
    %v210 = vsel %vm125, %v209, %v185
    %v211 = vsel %vm124, %v19, %v208
    %v212 = vsel %vm124, 0, %v210
    %v213 = vcosq.f32.pop %v211
    %v214 = vsinq.f32.pop %v211
    %vm215 = vweird.f32 %v19
    %v216 = vadd.s32 %v212, 3
    %v217 = vand.u32 %v216, 3
    %vm218 = vcmp.lt.s32.totalorder %v217, 2
    %vm219 = vcmp.eq.s32.totalorder %v217, 0
    %v220 = vxor.u32 %v214, 2147483648
    %v221 = vsel %vm219, %v213, %v220
    %vm222 = vcmp.eq.s32.totalorder %v217, 2
    %v223 = vxor.u32 %v213, 2147483648
    %v224 = vsel %vm222, %v223, %v214
    %v225 = vsel %vm218, %v221, %v224
    %v226 = vsel %vm215, nan, %v225
    %v227 = vld [vmem:[%s1] sm:$0xff]
    %v228 = vld [vmem:[%s1 + $0x8] sm:$0xff]
    %v229 = vld [vmem:[%s1 + $0x10] sm:$0xff]
    %v230 = vld [vmem:[%s1 + $0x18] sm:$0xff]
    %v231 = vld [vmem:[%s1 + $0x20] sm:$0xff]
    %v232 = vld [vmem:[%s1 + $0x28] sm:$0xff]
    %v233 = vld [vmem:[%s1 + $0x30] sm:$0xff]
    %v234 = vld [vmem:[%s1 + $0x38] sm:$0xff]
    %v235 = vld [vmem:[%s1 + $0x40] sm:$0xff]
    %v236 = vld [vmem:[%s1 + $0x48] sm:$0xff]
    %v237 = vld [vmem:[%s1 + $0x50] sm:$0xff]
    %v238 = vld [vmem:[%s1 + $0x58] sm:$0xff]
    %v239 = vld [vmem:[%s1 + $0x60] sm:$0xff]
    %v240 = vld [vmem:[%s1 + $0x68] sm:$0xff]
    %v241 = vld [vmem:[%s1 + $0x70] sm:$0xff]
    %v242 = vld [vmem:[%s1 + $0x78] sm:$0xff]
    %v243 = vld [vmem:[%s1 + $0x80] sm:$0xff]
    %v244 = vld [vmem:[%s1 + $0x88] sm:$0xff]
    %v245 = vld [vmem:[%s1 + $0x90] sm:$0xff]
    %v246 = vld [vmem:[%s1 + $0x98] sm:$0xff]
    %vm247 = vcmask 130048
    %v249 = vsel %vm247, %v227, 0
    %v252 = vsel %vm247, %v228, 0
    %v255 = vsel %vm247, %v229, 0
    %v258 = vsel %vm247, %v230, 0
    %v261 = vsel %vm247, %v231, 0
    %v264 = vsel %vm247, %v232, 0
    %v267 = vsel %vm247, %v233, 0
    %v270 = vsel %vm247, %v234, 0
    %v273 = vsel %vm247, %v235, 0
    %v276 = vsel %vm247, %v236, 0
    %v279 = vsel %vm247, %v237, 0
    %v282 = vsel %vm247, %v238, 0
    %v285 = vsel %vm247, %v239, 0
    %v288 = vsel %vm247, %v240, 0
    %v291 = vsel %vm247, %v241, 0
    %v294 = vsel %vm247, %v242, 0
    %v297 = vsel %vm247, %v243, 0
    %v300 = vsel %vm247, %v244, 0
    %v303 = vsel %vm247, %v245, 0
    %v306 = vsel %vm247, %v246, 0
    %308 = vmatprep.subr.mxu0 0.0
    %309 = vmatpush1.msra.mxu0 %v122
    %310 = vmatprep.subr.mxu0 0.0
    %311 = vmatpush1.msra.mxu0 %v226
    %312 = vmatprep.subr.mxu0 0.0
    %313 = vmatpush1.msra.mxu0 0.0
    %314 = vmatprep.subr.mxu0 0.0
    %315 = vmatpush1.msra.mxu0 0.0
    %316 = vmatprep.subr.mxu0 0.0
    %317 = vmatpush1.msra.mxu0 0.0
    %318 = vmatprep.subr.mxu0 0.0
    %319 = vmatpush1.msra.mxu0 0.0
    %320 = vmatprep.subr.mxu0 0.0
    %321 = vmatpush1.msra.mxu0 0.0
    %322 = vmatprep.subr.mxu0 0.0
    %323 = vmatpush1.msra.mxu0 0.0
    %324 = vmatprep.subr.mxu0 0.0
    %325 = vmatpush1.msra.mxu0 0.0
    %326 = vmatprep.subr.mxu0 0.0
    %327 = vmatpush1.msra.mxu0 0.0
    %328 = vmatprep.subr.mxu0 0.0
    %329 = vmatpush1.msra.mxu0 0.0
    %330 = vmatprep.subr.mxu0 0.0
    %331 = vmatpush1.msra.mxu0 0.0
    %332 = vmatprep.subr.mxu0 0.0
    %333 = vmatpush1.msra.mxu0 0.0
    %334 = vmatprep.subr.mxu0 0.0
    %335 = vmatpush1.msra.mxu0 0.0
    %336 = vmatprep.subr.mxu0 0.0
    %337 = vmatpush1.msra.mxu0 0.0
    %338 = vmatprep.subr.mxu0 0.0
    %339 = vmatpush1.msra.mxu0 0.0
    %340 = vmatprep.subr.mxu0 0.0
    %341 = vmatpush1.msra.mxu0 0.0
    %342 = vmatprep.subr.mxu0 0.0
    %343 = vmatpush1.msra.mxu0 0.0
    %344 = vmatprep.subr.mxu0 0.0
    %345 = vmatpush1.msra.mxu0 0.0
    %346 = vmatprep.subr.mxu0 0.0
    %347 = vmatpush1.msra.mxu0 0.0
    %348 = vmatprep.subr.mxu0 0.0
    %349 = vmatpush1.msra.mxu0 0.0
    %350 = vmatprep.subr.mxu0 0.0
    %351 = vmatpush1.msra.mxu0 0.0
    %352 = vmatprep.subr.mxu0 0.0
    %353 = vmatpush1.msra.mxu0 0.0
    %354 = vmatprep.subr.mxu0 0.0
    %355 = vmatpush1.msra.mxu0 0.0
    %356 = vmatprep.subr.mxu0 0.0
    %357 = vmatpush1.msra.mxu0 0.0
    %358 = vmatprep.subr.mxu0 0.0
    %359 = vmatpush1.msra.mxu0 0.0
    %360 = vmatprep.subr.mxu0 0.0
    %361 = vmatpush1.msra.mxu0 0.0
    %362 = vmatprep.subr.mxu0 0.0
    %363 = vmatpush1.msra.mxu0 0.0
    %364 = vmatprep.subr.mxu0 0.0
    %365 = vmatpush1.msra.mxu0 0.0
    %366 = vmatprep.subr.mxu0 0.0
    %367 = vmatpush1.msra.mxu0 0.0
    %368 = vmatprep.subr.mxu0 0.0
    %369 = vmatpush1.msra.mxu0 0.0
    %370 = vmatprep.subr.mxu0 0.0
    %371 = vmatpush1.msra.mxu0 0.0
    %372 = vmatprep.mubr.f32.mxu0 0.0
    %373 = vmatmul.mubr.f32.gmra.mrb[0].mxu0 %v249
    %v374 = vpop.f32.mrb[0].mxu0
    %v375 = vadd.f32 0.0, %v374
    %v376 = vpop.f32.mrb[0].mxu0
    %377 = vmatprep.mubr.f32.mxu0 0.0
    %378 = vmatmul.mubr.f32.gmra.mrb[0].mxu0 %v252
    %v379 = vpop.f32.mrb[0].mxu0
    %v380 = vadd.f32 0.0, %v379
    %v381 = vpop.f32.mrb[0].mxu0
    %382 = vmatprep.mubr.f32.mxu0 0.0
    %383 = vmatmul.mubr.f32.gmra.mrb[0].mxu0 %v255
    %v384 = vpop.f32.mrb[0].mxu0
    %v385 = vadd.f32 0.0, %v384
    %v386 = vpop.f32.mrb[0].mxu0
    %387 = vmatprep.mubr.f32.mxu0 0.0
    %388 = vmatmul.mubr.f32.gmra.mrb[0].mxu0 %v258
    %v389 = vpop.f32.mrb[0].mxu0
    %v390 = vadd.f32 0.0, %v389
    %v391 = vpop.f32.mrb[0].mxu0
    %392 = vmatprep.mubr.f32.mxu0 0.0
    %393 = vmatmul.mubr.f32.gmra.mrb[0].mxu0 %v261
    %v394 = vpop.f32.mrb[0].mxu0
    %v395 = vadd.f32 0.0, %v394
    %v396 = vpop.f32.mrb[0].mxu0
    %397 = vmatprep.mubr.f32.mxu0 0.0
    %398 = vmatmul.mubr.f32.gmra.mrb[0].mxu0 %v264
    %v399 = vpop.f32.mrb[0].mxu0
    %v400 = vadd.f32 0.0, %v399
    %v401 = vpop.f32.mrb[0].mxu0
    %402 = vmatprep.mubr.f32.mxu0 0.0
    %403 = vmatmul.mubr.f32.gmra.mrb[0].mxu0 %v267
    %v404 = vpop.f32.mrb[0].mxu0
    %v405 = vadd.f32 0.0, %v404
    %v406 = vpop.f32.mrb[0].mxu0
    %407 = vmatprep.mubr.f32.mxu0 0.0
    %408 = vmatmul.mubr.f32.gmra.mrb[0].mxu0 %v270
    %v409 = vpop.f32.mrb[0].mxu0
    %v410 = vadd.f32 0.0, %v409
    %v411 = vpop.f32.mrb[0].mxu0
    %412 = vmatprep.mubr.f32.mxu0 0.0
    %413 = vmatmul.mubr.f32.gmra.mrb[0].mxu0 %v273
    %v414 = vpop.f32.mrb[0].mxu0
    %v415 = vadd.f32 0.0, %v414
    %v416 = vpop.f32.mrb[0].mxu0
    %417 = vmatprep.mubr.f32.mxu0 0.0
    %418 = vmatmul.mubr.f32.gmra.mrb[0].mxu0 %v276
    %v419 = vpop.f32.mrb[0].mxu0
    %v420 = vadd.f32 0.0, %v419
    %v421 = vpop.f32.mrb[0].mxu0
    %422 = vmatprep.mubr.f32.mxu0 0.0
    %423 = vmatmul.mubr.f32.gmra.mrb[0].mxu0 %v279
    %v424 = vpop.f32.mrb[0].mxu0
    %v425 = vadd.f32 0.0, %v424
    %v426 = vpop.f32.mrb[0].mxu0
    %427 = vmatprep.mubr.f32.mxu0 0.0
    %428 = vmatmul.mubr.f32.gmra.mrb[0].mxu0 %v282
    %v429 = vpop.f32.mrb[0].mxu0
    %v430 = vadd.f32 0.0, %v429
    %v431 = vpop.f32.mrb[0].mxu0
    %432 = vmatprep.mubr.f32.mxu0 0.0
    %433 = vmatmul.mubr.f32.gmra.mrb[0].mxu0 %v285
    %v434 = vpop.f32.mrb[0].mxu0
    %v435 = vadd.f32 0.0, %v434
    %v436 = vpop.f32.mrb[0].mxu0
    %437 = vmatprep.mubr.f32.mxu0 0.0
    %438 = vmatmul.mubr.f32.gmra.mrb[0].mxu0 %v288
    %v439 = vpop.f32.mrb[0].mxu0
    %v440 = vadd.f32 0.0, %v439
    %v441 = vpop.f32.mrb[0].mxu0
    %442 = vmatprep.mubr.f32.mxu0 0.0
    %443 = vmatmul.mubr.f32.gmra.mrb[0].mxu0 %v291
    %v444 = vpop.f32.mrb[0].mxu0
    %v445 = vadd.f32 0.0, %v444
    %v446 = vpop.f32.mrb[0].mxu0
    %447 = vmatprep.mubr.f32.mxu0 0.0
    %448 = vmatmul.mubr.f32.gmra.mrb[0].mxu0 %v294
    %v449 = vpop.f32.mrb[0].mxu0
    %v450 = vadd.f32 0.0, %v449
    %v451 = vpop.f32.mrb[0].mxu0
    %452 = vmatprep.mubr.f32.mxu0 0.0
    %453 = vmatmul.mubr.f32.gmra.mrb[0].mxu0 %v297
    %v454 = vpop.f32.mrb[0].mxu0
    %v455 = vadd.f32 0.0, %v454
    %v456 = vpop.f32.mrb[0].mxu0
    %457 = vmatprep.mubr.f32.mxu0 0.0
    %458 = vmatmul.mubr.f32.gmra.mrb[0].mxu0 %v300
    %v459 = vpop.f32.mrb[0].mxu0
    %v460 = vadd.f32 0.0, %v459
    %v461 = vpop.f32.mrb[0].mxu0
    %462 = vmatprep.mubr.f32.mxu0 0.0
    %463 = vmatmul.mubr.f32.gmra.mrb[0].mxu0 %v303
    %v464 = vpop.f32.mrb[0].mxu0
    %v465 = vadd.f32 0.0, %v464
    %v466 = vpop.f32.mrb[0].mxu0
    %467 = vmatprep.mubr.f32.mxu0 0.0
    %468 = vmatmul.mubr.f32.gmra.mrb[0].mxu0 %v306
    %v469 = vpop.f32.mrb[0].mxu0
    %v470 = vadd.f32 0.0, %v469
    %v471 = vpop.f32.mrb[0].mxu0
    %472 = vdwg.mxu0
    %v473 = vmul.f32 %v375, %v395
    %v474 = vmul.f32 %v380, %v400
    %v475 = vmul.f32 %v385, %v405
    %v476 = vmul.f32 %v390, %v410
    %v477 = vmul.f32 %v415, %v435
    %v478 = vmul.f32 %v420, %v440
    %v479 = vmul.f32 %v425, %v445
    %v480 = vmul.f32 %v430, %v450
    %v481 = vmul.f32 %v473, %v477
    %v482 = vmul.f32 %v474, %v478
    %v483 = vmul.f32 %v475, %v479
    %v484 = vmul.f32 %v476, %v480
    %v485 = vmul.f32 %v481, %v455
    %v486 = vmul.f32 %v482, %v460
    %v487 = vmul.f32 %v483, %v465
    %v488 = vmul.f32 %v484, %v470
    %v489 = vld [vmem:[%s2] sm:$0xff]
    %v490 = vld [vmem:[%s2 + $0x8] sm:$0xff]
    %v491 = vld [vmem:[%s2 + $0x10] sm:$0xff]
    %v492 = vld [vmem:[%s2 + $0x18] sm:$0xff]
    %v493 = vld [vmem:[%s2 + $0x20] sm:$0xff]
    %vm494 = vcmask 261120
    %v496 = vsel %vm494, %v489, 0
    %v499 = vsel %vm494, %v490, 0
    %v502 = vsel %vm494, %v491, 0
    %v505 = vsel %vm494, %v492, 0
    %v508 = vsel %vm494, %v493, 0
    %510 = vmatprep.subr.mxu0 0.0
    %511 = vmatpush1.msra.mxu0 %v485
    %512 = vmatprep.subr.mxu0 0.0
    %513 = vmatpush1.msra.mxu0 %v486
    %514 = vmatprep.subr.mxu0 0.0
    %515 = vmatpush1.msra.mxu0 %v487
    %516 = vmatprep.subr.mxu0 0.0
    %517 = vmatpush1.msra.mxu0 %v488
    %518 = vmatprep.subr.mxu0 0.0
    %519 = vmatpush1.msra.mxu0 0.0
    %520 = vmatprep.subr.mxu0 0.0
    %521 = vmatpush1.msra.mxu0 0.0
    %522 = vmatprep.subr.mxu0 0.0
    %523 = vmatpush1.msra.mxu0 0.0
    %524 = vmatprep.subr.mxu0 0.0
    %525 = vmatpush1.msra.mxu0 0.0
    %526 = vmatprep.subr.mxu0 0.0
    %527 = vmatpush1.msra.mxu0 0.0
    %528 = vmatprep.subr.mxu0 0.0
    %529 = vmatpush1.msra.mxu0 0.0
    %530 = vmatprep.subr.mxu0 0.0
    %531 = vmatpush1.msra.mxu0 0.0
    %532 = vmatprep.subr.mxu0 0.0
    %533 = vmatpush1.msra.mxu0 0.0
    %534 = vmatprep.subr.mxu0 0.0
    %535 = vmatpush1.msra.mxu0 0.0
    %536 = vmatprep.subr.mxu0 0.0
    %537 = vmatpush1.msra.mxu0 0.0
    %538 = vmatprep.subr.mxu0 0.0
    %539 = vmatpush1.msra.mxu0 0.0
    %540 = vmatprep.subr.mxu0 0.0
    %541 = vmatpush1.msra.mxu0 0.0
    %542 = vmatprep.subr.mxu0 0.0
    %543 = vmatpush1.msra.mxu0 0.0
    %544 = vmatprep.subr.mxu0 0.0
    %545 = vmatpush1.msra.mxu0 0.0
    %546 = vmatprep.subr.mxu0 0.0
    %547 = vmatpush1.msra.mxu0 0.0
    %548 = vmatprep.subr.mxu0 0.0
    %549 = vmatpush1.msra.mxu0 0.0
    %550 = vmatprep.subr.mxu0 0.0
    %551 = vmatpush1.msra.mxu0 0.0
    %552 = vmatprep.subr.mxu0 0.0
    %553 = vmatpush1.msra.mxu0 0.0
    %554 = vmatprep.subr.mxu0 0.0
    %555 = vmatpush1.msra.mxu0 0.0
    %556 = vmatprep.subr.mxu0 0.0
    %557 = vmatpush1.msra.mxu0 0.0
    %558 = vmatprep.subr.mxu0 0.0
    %559 = vmatpush1.msra.mxu0 0.0
    %560 = vmatprep.subr.mxu0 0.0
    %561 = vmatpush1.msra.mxu0 0.0
    %562 = vmatprep.subr.mxu0 0.0
    %563 = vmatpush1.msra.mxu0 0.0
    %564 = vmatprep.subr.mxu0 0.0
    %565 = vmatpush1.msra.mxu0 0.0
    %566 = vmatprep.subr.mxu0 0.0
    %567 = vmatpush1.msra.mxu0 0.0
    %568 = vmatprep.subr.mxu0 0.0
    %569 = vmatpush1.msra.mxu0 0.0
    %570 = vmatprep.subr.mxu0 0.0
    %571 = vmatpush1.msra.mxu0 0.0
    %572 = vmatprep.subr.mxu0 0.0
    %573 = vmatpush1.msra.mxu0 0.0
    %574 = vmatprep.mubr.f32.mxu0 0.0
    %575 = vmatmul.mubr.f32.gmra.mrb[0].mxu0 %v496
    %v576 = vpop.f32.mrb[0].mxu0
    %v577 = vadd.f32 0.0, %v576
    %v578 = vpop.f32.mrb[0].mxu0
    %579 = vmatprep.mubr.f32.mxu0 0.0
    %580 = vmatmul.mubr.f32.gmra.mrb[0].mxu0 %v499
    %v581 = vpop.f32.mrb[0].mxu0
    %v582 = vadd.f32 0.0, %v581
    %v583 = vpop.f32.mrb[0].mxu0
    %584 = vmatprep.mubr.f32.mxu0 0.0
    %585 = vmatmul.mubr.f32.gmra.mrb[0].mxu0 %v502
    %v586 = vpop.f32.mrb[0].mxu0
    %v587 = vadd.f32 0.0, %v586
    %v588 = vpop.f32.mrb[0].mxu0
    %589 = vmatprep.mubr.f32.mxu0 0.0
    %590 = vmatmul.mubr.f32.gmra.mrb[0].mxu0 %v505
    %v591 = vpop.f32.mrb[0].mxu0
    %v592 = vadd.f32 0.0, %v591
    %v593 = vpop.f32.mrb[0].mxu0
    %594 = vmatprep.mubr.f32.mxu0 0.0
    %595 = vmatmul.mubr.f32.gmra.mrb[0].mxu0 %v508
    %v596 = vpop.f32.mrb[0].mxu0
    %v597 = vadd.f32 0.0, %v596
    %v598 = vpop.f32.mrb[0].mxu0
    %599 = vdwg.mxu0
    %v600 = vmul.f32 %v577, %v577
    %v601 = vmul.f32 %v582, %v582
    %v602 = vmul.f32 %v587, %v587
    %v603 = vmul.f32 %v592, %v592
    %v604 = vmul.f32 %v597, %v597
    %v605 = vld [vmem:[%s3] sm:$0xff]
    %vm606 = vcmask 326656
    %v608 = vsel %vm606, %v605, 0
    %610 = vmatprep.subr.mxu0 0.0
    %611 = vmatpush1.msra.mxu0 %v600
    %612 = vmatprep.subr.mxu0 0.0
    %613 = vmatpush1.msra.mxu0 %v601
    %614 = vmatprep.subr.mxu0 0.0
    %615 = vmatpush1.msra.mxu0 %v602
    %616 = vmatprep.subr.mxu0 0.0
    %617 = vmatpush1.msra.mxu0 %v603
    %618 = vmatprep.subr.mxu0 0.0
    %619 = vmatpush1.msra.mxu0 %v604
    %620 = vmatprep.subr.mxu0 0.0
    %621 = vmatpush1.msra.mxu0 0.0
    %622 = vmatprep.subr.mxu0 0.0
    %623 = vmatpush1.msra.mxu0 0.0
    %624 = vmatprep.subr.mxu0 0.0
    %625 = vmatpush1.msra.mxu0 0.0
    %626 = vmatprep.subr.mxu0 0.0
    %627 = vmatpush1.msra.mxu0 0.0
    %628 = vmatprep.subr.mxu0 0.0
    %629 = vmatpush1.msra.mxu0 0.0
    %630 = vmatprep.subr.mxu0 0.0
    %631 = vmatpush1.msra.mxu0 0.0
    %632 = vmatprep.subr.mxu0 0.0
    %633 = vmatpush1.msra.mxu0 0.0
    %634 = vmatprep.subr.mxu0 0.0
    %635 = vmatpush1.msra.mxu0 0.0
    %636 = vmatprep.subr.mxu0 0.0
    %637 = vmatpush1.msra.mxu0 0.0
    %638 = vmatprep.subr.mxu0 0.0
    %639 = vmatpush1.msra.mxu0 0.0
    %640 = vmatprep.subr.mxu0 0.0
    %641 = vmatpush1.msra.mxu0 0.0
    %642 = vmatprep.subr.mxu0 0.0
    %643 = vmatpush1.msra.mxu0 0.0
    %644 = vmatprep.subr.mxu0 0.0
    %645 = vmatpush1.msra.mxu0 0.0
    %646 = vmatprep.subr.mxu0 0.0
    %647 = vmatpush1.msra.mxu0 0.0
    %648 = vmatprep.subr.mxu0 0.0
    %649 = vmatpush1.msra.mxu0 0.0
    %650 = vmatprep.subr.mxu0 0.0
    %651 = vmatpush1.msra.mxu0 0.0
    %652 = vmatprep.subr.mxu0 0.0
    %653 = vmatpush1.msra.mxu0 0.0
    %654 = vmatprep.subr.mxu0 0.0
    %655 = vmatpush1.msra.mxu0 0.0
    %656 = vmatprep.subr.mxu0 0.0
    %657 = vmatpush1.msra.mxu0 0.0
    %658 = vmatprep.subr.mxu0 0.0
    %659 = vmatpush1.msra.mxu0 0.0
    %660 = vmatprep.subr.mxu0 0.0
    %661 = vmatpush1.msra.mxu0 0.0
    %662 = vmatprep.subr.mxu0 0.0
    %663 = vmatpush1.msra.mxu0 0.0
    %664 = vmatprep.subr.mxu0 0.0
    %665 = vmatpush1.msra.mxu0 0.0
    %666 = vmatprep.subr.mxu0 0.0
    %667 = vmatpush1.msra.mxu0 0.0
    %668 = vmatprep.subr.mxu0 0.0
    %669 = vmatpush1.msra.mxu0 0.0
    %670 = vmatprep.subr.mxu0 0.0
    %671 = vmatpush1.msra.mxu0 0.0
    %672 = vmatprep.subr.mxu0 0.0
    %673 = vmatpush1.msra.mxu0 0.0
    %674 = vmatprep.mubr.f32.mxu0 0.0
    %675 = vmatmul.mubr.f32.gmra.mrb[0].mxu0 %v608
    %v676 = vpop.f32.mrb[0].mxu0
    %v677 = vadd.f32 0.0, %v676
    %v678 = vpop.f32.mrb[0].mxu0
    %679 = vdwg.mxu0
    %680 = vst [vmem:[#allocation2] sm:$0xff] %v677
    // Predicated region
    $region18: #{tpu_custom_call.1} parent=1 // pred_check
      _
    $region19: #{tpu_custom_call.1} parent=1 // pred_check_branch
      %682 = sbr.rel (0) target = $region21
    $region20: #{tpu_custom_call.1} parent=1 // pred_region
      %s684 = ssub.s32 128, 128
      %685 = vsyncadd [#allocation3], %s684
      %s687 = sshll.u32 [#allocation2], 4
      %s688 = int_to_ptr.vmem [resolvable:$true] %s687
      %690 = dma.vmem_to_hbm [thread:$0]  %s688, 128, %s4, [#allocation3]
    $region21: #{tpu_custom_call.1} parent=1 // pred_fallthru
      _
    // Predicated region
    $region22: #{tpu_custom_call.1} parent=1 // pred_check
      _
    $region23: #{tpu_custom_call.1} parent=1 // pred_check_branch
      %692 = sbr.rel (0) target = $region25
    $region24: #{tpu_custom_call.1} parent=1 // pred_region
      %693 = dma.done [#allocation3], 128
    $region25: #{tpu_custom_call.1} parent=1 // pred_fallthru
      _
    %694 = vsyncpa [#allocation3], 1

</llo_original>
